<compile_context>
chip_gen: v6e
topology: v6e:2x2x1
jax: 0.10.0
libtpu: 0.0.40
codegen_flags: <defaults>
</compile_context>

<pallas_src>
import numpy as np
import jax
import jax.numpy as jnp
from jax.experimental import pallas as pl
from jax.experimental.pallas import tpu as pltpu


def _round_up(a, m):
    return ((a + m - 1) // m) * m


def _embed_kernel(idx_ref, bd_ref, out_ref):
    # idx_ref: (TB, F)        int32 global row indices for this batch tile.
    # bd_ref:  (F*Vp, F*D)    f32 block-diagonal table (resident, const index).
    # out_ref: (TB, F*D)      f32 lane-dense output tile.
    idx = idx_ref[...]                       # (TB, F)
    bd = bd_ref[...]                         # (F*Vp, F*D)
    TB, F = idx.shape
    FVp, _ = bd.shape
    Vp = FVp // F

    # (1, Vp) iota; the (TB,1)==(1,Vp) compare broadcasts, so no (TB, Vp)
    # row-id intermediate is materialized.
    col_ids = jax.lax.broadcasted_iota(jnp.int32, (1, Vp), 1)

    # F is small and static -> unrolled; each piece is exactly Vp (a multiple
    # of 128) lanes wide, so the lane-concat is vreg-granular (free-ish).
    hots = [(idx[:, f:f + 1] == col_ids).astype(bd.dtype) for f in range(F)]
    multihot = jnp.concatenate(hots, axis=-1)            # (TB, F*Vp)

    # Single fused MXU matmul: K = F*Vp, N = F*D (full lane width), followed
    # by one unmasked full-width store.
    out_ref[...] = jnp.dot(
        multihot, bd, preferred_element_type=jnp.float32
    ).astype(out_ref.dtype)


def features_embedding(x, offsets, table, *, block_b=None):
    """x: (B, F) int; offsets: (F,) int; table: (V, D) f32 -> (B, F, D) f32."""
    B, F = x.shape
    V, D = table.shape

    # Pad the vocab to a lane multiple so each per-field one-hot is an exact
    # number of vregs wide.
    Vp = _round_up(V, 128)

    # Global indices precomputed in the wrapper (no per-step scalar work).
    idx = x.astype(jnp.int32) + offsets.astype(jnp.int32)[None, :]   # (B, F)

    # Block-diagonal table (F*Vp, F*D): block f holds the full table in rows
    # [f*Vp, f*Vp+V) and columns [f*D, (f+1)*D).  Built once per call; for a
    # real model precompute/jit this alongside the weights.
    tab_pad = jnp.zeros((Vp, D), table.dtype).at[:V, :].set(table)
    bd = jnp.zeros((F * Vp, F * D), table.dtype)
    for f in range(F):
        bd = bd.at[f * Vp:(f + 1) * Vp, f * D:(f + 1) * D].set(tab_pad)

    if block_b is None:
        # Target ~2 MiB of output per grid step (HBM-writeback bound regime),
        # capped so the (TB, F*Vp) one-hot stays <= ~8 MiB of VMEM, and so the
        # grid keeps >= 2 steps (both TensorCores busy on v7x) when B allows.
        tgt = max(8, (2 << 20) // (F * D * 4))
        onehot_cap = max(8, (8 << 20) // (F * Vp * 4))
        block_b = min(tgt, onehot_cap, 4096)
        if B >= 16:
            block_b = min(block_b, _round_up(pl.cdiv(B, 2), 8))
        block_b = min(block_b, _round_up(B, 8))
    # Enforce the (8, 128) block-shape rule for user-supplied values too.
    block_b = max(8, _round_up(int(block_b), 8))

    # Pad the batch so every block is full (padded rows use valid index 0 and
    # are sliced away afterwards).
    Bp = _round_up(B, block_b)
    if Bp != B:
        idx = jnp.pad(idx, ((0, Bp - B), (0, 0)))

    out_flat = pl.pallas_call(
        _embed_kernel,
        out_shape=jax.ShapeDtypeStruct((Bp, F * D), table.dtype),
        grid=(Bp // block_b,),
        in_specs=[
            # One batch tile of global indices per grid step.
            pl.BlockSpec((block_b, F), lambda i: (i, 0)),
            # Whole block-diagonal table, constant block index -> fetched
            # once and resident in VMEM (256 KiB at the demo sizes).
            pl.BlockSpec((F * Vp, F * D), lambda i: (0, 0)),
        ],
        # Lane-dense output slab: last dim F*D (multiple of 128 lanes here).
        out_specs=pl.BlockSpec((block_b, F * D), lambda i: (i, 0)),
        compiler_params=pltpu.CompilerParams(
            dimension_semantics=("parallel",),
            vmem_limit_bytes=32 * 1024 * 1024,
        ),
    )(idx, bd)

    return out_flat[:B].reshape(B, F, D)


if __name__ == "__main__":
    # Small, deterministic problem consistent with the module.
    field_dims = (10, 20, 30, 40)   # num_fields = 4, vocab = 100
    embed_dim = 32
    batch = 8
    num_fields = len(field_dims)
    vocab = int(sum(field_dims))

    key = jax.random.PRNGKey(0)
    k_tab, k_x = jax.random.split(key)

    # torch.nn.init.xavier_uniform_ on weight of shape (V, D):
    # bound = sqrt(6 / (V + D)), uniform in [-bound, bound].
    bound = float(np.sqrt(6.0 / (vocab + embed_dim)))
    table = jax.random.uniform(
        k_tab, (vocab, embed_dim), jnp.float32, minval=-bound, maxval=bound)

    # Field-local indices in [0, field_dims[f]).
    ks = jax.random.split(k_x, num_fields)
    cols = [jax.random.randint(ks[f], (batch,), 0, field_dims[f], dtype=jnp.int32)
            for f in range(num_fields)]
    x = jnp.stack(cols, axis=1)  # (B, F) int32

    offsets = jnp.asarray(
        np.array((0, *np.cumsum(field_dims)[:-1]), dtype=np.int32))  # (F,)

    out = features_embedding(x, offsets, table)
    out = jax.block_until_ready(out)

    # Pure-JAX reference of the PyTorch forward.
    ref = jnp.take(table, x + offsets[None, :], axis=0)
    assert out.shape == (batch, num_fields, embed_dim)
    np.testing.assert_allclose(np.asarray(out), np.asarray(ref),
                               rtol=1e-6, atol=1e-6)

    print("KERNEL_OK")
</pallas_src>

<mosaic_0001>
module attributes {stable_mosaic.version = 11 : i64} {
  func.func @_embed_kernel(%arg0: i32, %arg1: memref<8x4xi32, #tpu.memory_space<vmem>>, %arg2: memref<512x128xf32, #tpu.memory_space<vmem>>, %arg3: memref<8x128xf32, #tpu.memory_space<vmem>>) attributes {dimension_semantics = [#tpu.dimension_semantics<parallel>], iteration_bounds = array<i64: 1>, scalar_prefetch = 0 : i64, scratch_operands = 0 : i64, tpu.core_type = #tpu.core_type<tc>, window_params = [{transform_indices = @transform_0, window_bounds = array<i64: 8, 4>}, {pipeline_mode = #tpu.pipeline_mode<synchronous>, transform_indices = @transform_1, window_bounds = array<i64: 512, 128>}, {transform_indices = @transform_2, window_bounds = array<i64: 8, 128>}]} {
    %c0 = arith.constant 0 : index
    %c0_0 = arith.constant 0 : index
    %0 = vector.load %arg1[%c0, %c0_0] : memref<8x4xi32, #tpu.memory_space<vmem>>, vector<8x4xi32>
    %c0_1 = arith.constant 0 : index
    %c0_2 = arith.constant 0 : index
    %1 = vector.load %arg2[%c0_1, %c0_2] : memref<512x128xf32, #tpu.memory_space<vmem>>, vector<512x128xf32>
    %2 = tpu.iota {dimensions = array<i32: 1>} : vector<1x128xi32>
    %3 = vector.extract_strided_slice %0 {offsets = [0, 0], sizes = [8, 1], strides = [1, 1]} : vector<8x4xi32> to vector<8x1xi32>
    %4 = vector.broadcast %3 : vector<8x1xi32> to vector<8x128xi32>
    %5 = vector.broadcast %2 : vector<1x128xi32> to vector<8x128xi32>
    %6 = arith.cmpi eq, %4, %5 : vector<8x128xi32>
    %7 = arith.extui %6 : vector<8x128xi1> to vector<8x128xi32>
    %8 = arith.sitofp %7 : vector<8x128xi32> to vector<8x128xf32>
    %9 = vector.extract_strided_slice %0 {offsets = [0, 1], sizes = [8, 1], strides = [1, 1]} : vector<8x4xi32> to vector<8x1xi32>
    %10 = vector.broadcast %9 : vector<8x1xi32> to vector<8x128xi32>
    %11 = vector.broadcast %2 : vector<1x128xi32> to vector<8x128xi32>
    %12 = arith.cmpi eq, %10, %11 : vector<8x128xi32>
    %13 = arith.extui %12 : vector<8x128xi1> to vector<8x128xi32>
    %14 = arith.sitofp %13 : vector<8x128xi32> to vector<8x128xf32>
    %15 = vector.extract_strided_slice %0 {offsets = [0, 2], sizes = [8, 1], strides = [1, 1]} : vector<8x4xi32> to vector<8x1xi32>
    %16 = vector.broadcast %15 : vector<8x1xi32> to vector<8x128xi32>
    %17 = vector.broadcast %2 : vector<1x128xi32> to vector<8x128xi32>
    %18 = arith.cmpi eq, %16, %17 : vector<8x128xi32>
    %19 = arith.extui %18 : vector<8x128xi1> to vector<8x128xi32>
    %20 = arith.sitofp %19 : vector<8x128xi32> to vector<8x128xf32>
    %21 = vector.extract_strided_slice %0 {offsets = [0, 3], sizes = [8, 1], strides = [1, 1]} : vector<8x4xi32> to vector<8x1xi32>
    %22 = vector.broadcast %21 : vector<8x1xi32> to vector<8x128xi32>
    %23 = vector.broadcast %2 : vector<1x128xi32> to vector<8x128xi32>
    %24 = arith.cmpi eq, %22, %23 : vector<8x128xi32>
    %25 = arith.extui %24 : vector<8x128xi1> to vector<8x128xi32>
    %26 = arith.sitofp %25 : vector<8x128xi32> to vector<8x128xf32>
    %27 = tpu.concatenate %8, %14, %20, %26 in 1 : vector<8x128xf32>, vector<8x128xf32>, vector<8x128xf32>, vector<8x128xf32> -> vector<8x512xf32>
    %cst = arith.constant dense<0.000000e+00> : vector<8x128xf32>
    %28 = tpu.matmul %27, %1, %cst {dimension_numbers = #tpu.dot_dimension_numbers<[1], [0], [0], [1], [0, 0, 1, 1], [], []>} : vector<8x512xf32>, vector<512x128xf32>, vector<8x128xf32> -> vector<8x128xf32>
    %c0_3 = arith.constant 0 : index
    %c0_4 = arith.constant 0 : index
    %29 = vector.load %arg3[%c0_3, %c0_4] : memref<8x128xf32, #tpu.memory_space<vmem>>, vector<8x128xf32>
    tpu.vector_store %arg3[%c0_3, %c0_4], %28 {strides = array<i32>} : memref<8x128xf32, #tpu.memory_space<vmem>>, vector<8x128xf32>,
    return
  }
  func.func @transform_0(%arg0: i32) -> (i32, i32) {
    %c0_i32 = arith.constant 0 : i32
    %c0_i32_0 = arith.constant 0 : i32
    return %arg0, %c0_i32 : i32, i32
  }
  func.func @transform_1(%arg0: i32) -> (i32, i32) {
    %c0_i32 = arith.constant 0 : i32
    %c0_i32_0 = arith.constant 0 : i32
    %c0_i32_1 = arith.constant 0 : i32
    return %c0_i32, %c0_i32_0 : i32, i32
  }
  func.func @transform_2(%arg0: i32) -> (i32, i32) {
    %c0_i32 = arith.constant 0 : i32
    %c0_i32_0 = arith.constant 0 : i32
    return %arg0, %c0_i32 : i32, i32
  }
}

</mosaic_0001>

<llo_original>
// kernel: tpu_custom_call.1
$region0: #{tpu_custom_call.1}
  #allocation0 [shape = 'u32[]', space=smem, size = 0x4, offset = 0x4, fixed_abs, tag = 'smem constant byte address 0x4 - core index']
  #allocation1 [shape = 'u32[144,128]{1,0:T(1,128)}', space=vmem, size = 0x12000, scoped, tag = 'internal scratch']
  %s0 = inlined_call_operand.vmem [shape: s32[8,4], index: 0, kind: input, shape index: {}]
  %s1 = inlined_call_operand.hbm [shape: f32[512,128], index: 1, kind: input, shape index: {}]
  %s2 = inlined_call_operand.hbm [shape: f32[8,128], index: 2, kind: output, shape index: {}]
  %s3 = sld [smem:[#allocation0]]
  $region22: #{tpu_custom_call.1} parent=0
    _
  %s5 = ssub.s32 1, %s3
  %s6 = scalar_select 0, %s5, %s3
  $region1: #{tpu_custom_call.1} parent=0
    #allocation2 [shape = 'u8[262144]{0}', space=vmem, size = 0x40000, scoped, tag = 'input window, operand 1, single buffered']
    #allocation3 [shape = 's32[1]{0}', space=sflag, size = 0x4, scoped, tag = 'scoped memory for tpu_custom_call.1']
    #allocation4 [shape = 's32[1]{0}', space=sflag, size = 0x4, scoped, tag = 'scoped memory for tpu_custom_call.1']
    #allocation5 [shape = 'u8[4096]{0}', space=vmem, size = 0x1000, scoped, tag = 'output window, operand 0, single buffered']
    %7 = vsyncpa [#allocation3], 0
    %8 = vsyncpa [#allocation4], 0
    // Predicated region
    $region2: #{tpu_custom_call.1} parent=1 // pred_check
      _
    $region3: #{tpu_custom_call.1} parent=1 // pred_check_branch
      %10 = sbr.rel (0) target = $region5
    $region4: #{tpu_custom_call.1} parent=1 // pred_region
      _
    $region5: #{tpu_custom_call.1} parent=1 // pred_fallthru
      _
    // Predicated region
    $region6: #{tpu_custom_call.1} parent=1 // pred_check
      _
    $region7: #{tpu_custom_call.1} parent=1 // pred_check_branch
      %12 = sbr.rel (0) target = $region9
    $region8: #{tpu_custom_call.1} parent=1 // pred_region
      %s14 = ssub.s32 8192, 8192
      %15 = vsyncadd [#allocation3], %s14
      %s16 = sshll.u32 [#allocation2], 4
      %s17 = int_to_ptr.vmem [resolvable:$true] %s16
      %22 = dma.hbm_to_vmem [thread:$0]  %s1, 8192, %s17, [#allocation3], 128, 128, 8
    $region9: #{tpu_custom_call.1} parent=1 // pred_fallthru
      _
    // Predicated region
    $region10: #{tpu_custom_call.1} parent=1 // pred_check
      _
    $region11: #{tpu_custom_call.1} parent=1 // pred_check_branch
      %24 = sbr.rel (0) target = $region13
    $region12: #{tpu_custom_call.1} parent=1 // pred_region
      %25 = dma.done [#allocation3], 8192
    $region13: #{tpu_custom_call.1} parent=1 // pred_fallthru
      _
    %v26 = vld [vmem:[%s0] sm:$0xff]
    %v27 = vld [vmem:[#allocation2] sm:$0xff]
    %v28 = vld [vmem:[#allocation2 + $0x8] sm:$0xff]
    %v29 = vld [vmem:[#allocation2 + $0x10] sm:$0xff]
    %v30 = vld [vmem:[#allocation2 + $0x18] sm:$0xff]
    %v31 = vld [vmem:[#allocation2 + $0x20] sm:$0xff]
    %v32 = vld [vmem:[#allocation2 + $0x28] sm:$0xff]
    %v33 = vld [vmem:[#allocation2 + $0x30] sm:$0xff]
    %v34 = vld [vmem:[#allocation2 + $0x38] sm:$0xff]
    %v35 = vld [vmem:[#allocation2 + $0x40] sm:$0xff]
    %v36 = vld [vmem:[#allocation2 + $0x48] sm:$0xff]
    %v37 = vld [vmem:[#allocation2 + $0x50] sm:$0xff]
    %v38 = vld [vmem:[#allocation2 + $0x58] sm:$0xff]
    %v39 = vld [vmem:[#allocation2 + $0x60] sm:$0xff]
    %v40 = vld [vmem:[#allocation2 + $0x68] sm:$0xff]
    %v41 = vld [vmem:[#allocation2 + $0x70] sm:$0xff]
    %v42 = vld [vmem:[#allocation2 + $0x78] sm:$0xff]
    %v43 = vld [vmem:[#allocation2 + $0x80] sm:$0xff]
    %v44 = vld [vmem:[#allocation2 + $0x88] sm:$0xff]
    %v45 = vld [vmem:[#allocation2 + $0x90] sm:$0xff]
    %v46 = vld [vmem:[#allocation2 + $0x98] sm:$0xff]
    %v47 = vld [vmem:[#allocation2 + $0xa0] sm:$0xff]
    %v48 = vld [vmem:[#allocation2 + $0xa8] sm:$0xff]
    %v49 = vld [vmem:[#allocation2 + $0xb0] sm:$0xff]
    %v50 = vld [vmem:[#allocation2 + $0xb8] sm:$0xff]
    %v51 = vld [vmem:[#allocation2 + $0xc0] sm:$0xff]
    %v52 = vld [vmem:[#allocation2 + $0xc8] sm:$0xff]
    %v53 = vld [vmem:[#allocation2 + $0xd0] sm:$0xff]
    %v54 = vld [vmem:[#allocation2 + $0xd8] sm:$0xff]
    %v55 = vld [vmem:[#allocation2 + $0xe0] sm:$0xff]
    %v56 = vld [vmem:[#allocation2 + $0xe8] sm:$0xff]
    %v57 = vld [vmem:[#allocation2 + $0xf0] sm:$0xff]
    %v58 = vld [vmem:[#allocation2 + $0xf8] sm:$0xff]
    %v59 = vld [vmem:[#allocation2 + $0x100] sm:$0xff]
    %v60 = vld [vmem:[#allocation2 + $0x108] sm:$0xff]
    %v61 = vld [vmem:[#allocation2 + $0x110] sm:$0xff]
    %v62 = vld [vmem:[#allocation2 + $0x118] sm:$0xff]
    %v63 = vld [vmem:[#allocation2 + $0x120] sm:$0xff]
    %v64 = vld [vmem:[#allocation2 + $0x128] sm:$0xff]
    %v65 = vld [vmem:[#allocation2 + $0x130] sm:$0xff]
    %v66 = vld [vmem:[#allocation2 + $0x138] sm:$0xff]
    %v67 = vld [vmem:[#allocation2 + $0x140] sm:$0xff]
    %v68 = vld [vmem:[#allocation2 + $0x148] sm:$0xff]
    %v69 = vld [vmem:[#allocation2 + $0x150] sm:$0xff]
    %v70 = vld [vmem:[#allocation2 + $0x158] sm:$0xff]
    %v71 = vld [vmem:[#allocation2 + $0x160] sm:$0xff]
    %v72 = vld [vmem:[#allocation2 + $0x168] sm:$0xff]
    %v73 = vld [vmem:[#allocation2 + $0x170] sm:$0xff]
    %v74 = vld [vmem:[#allocation2 + $0x178] sm:$0xff]
    %v75 = vld [vmem:[#allocation2 + $0x180] sm:$0xff]
    %v76 = vld [vmem:[#allocation2 + $0x188] sm:$0xff]
    %v77 = vld [vmem:[#allocation2 + $0x190] sm:$0xff]
    %v78 = vld [vmem:[#allocation2 + $0x198] sm:$0xff]
    %v79 = vld [vmem:[#allocation2 + $0x1a0] sm:$0xff]
    %v80 = vld [vmem:[#allocation2 + $0x1a8] sm:$0xff]
    %v81 = vld [vmem:[#allocation2 + $0x1b0] sm:$0xff]
    %v82 = vld [vmem:[#allocation2 + $0x1b8] sm:$0xff]
    %v83 = vld [vmem:[#allocation2 + $0x1c0] sm:$0xff]
    %v84 = vld [vmem:[#allocation2 + $0x1c8] sm:$0xff]
    %v85 = vld [vmem:[#allocation2 + $0x1d0] sm:$0xff]
    %v86 = vld [vmem:[#allocation2 + $0x1d8] sm:$0xff]
    %v87 = vld [vmem:[#allocation2 + $0x1e0] sm:$0xff]
    %v88 = vld [vmem:[#allocation2 + $0x1e8] sm:$0xff]
    %v89 = vld [vmem:[#allocation2 + $0x1f0] sm:$0xff]
    %v90 = vld [vmem:[#allocation2 + $0x1f8] sm:$0xff]
    %v91 = vlaneseq
    %v92 = vand.u32 %v91, 127
    %93 = vset.pattern.permute.xlu0 0
    %94 = vperm.xlu0 %93, %v26
    %v95 = vpop.permute.xlu0 %94
    %vm96 = vcmp.eq.s32.totalorder %v95, %v92
    %v97 = vsel %vm96, 1, 0
    %v98 = vcvt.s32.f32 %v97
    %99 = vset.pattern.permute.xlu0 1
    %100 = vperm.xlu0 %99, %v26
    %v101 = vpop.permute.xlu0 %100
    %vm102 = vcmp.eq.s32.totalorder %v101, %v92
    %v103 = vsel %vm102, 1, 0
    %v104 = vcvt.s32.f32 %v103
    %105 = vset.pattern.permute.xlu0 2
    %106 = vperm.xlu0 %105, %v26
    %v107 = vpop.permute.xlu0 %106
    %vm108 = vcmp.eq.s32.totalorder %v107, %v92
    %v109 = vsel %vm108, 1, 0
    %v110 = vcvt.s32.f32 %v109
    %111 = vset.pattern.permute.xlu0 3
    %112 = vperm.xlu0 %111, %v26
    %v113 = vpop.permute.xlu0 %112
    %vm114 = vcmp.eq.s32.totalorder %v113, %v92
    %v115 = vsel %vm114, 1, 0
    %v116 = vcvt.s32.f32 %v115
    %117 = vmatprep.subr.mxu0 0.0
    %118 = vmatpush1.msra.mxu0 %v42
    %119 = vmatprep.subr.mxu0 0.0
    %120 = vmatpush1.msra.mxu0 %v41
    %121 = vmatprep.subr.mxu0 0.0
    %122 = vmatpush1.msra.mxu0 %v40
    %123 = vmatprep.subr.mxu0 0.0
    %124 = vmatpush1.msra.mxu0 %v39
    %125 = vmatprep.subr.mxu0 0.0
    %126 = vmatpush1.msra.mxu0 %v38
    %127 = vmatprep.subr.mxu0 0.0
    %128 = vmatpush1.msra.mxu0 %v37
    %129 = vmatprep.subr.mxu0 0.0
    %130 = vmatpush1.msra.mxu0 %v36
    %131 = vmatprep.subr.mxu0 0.0
    %132 = vmatpush1.msra.mxu0 %v35
    %133 = vmatprep.subr.mxu0 0.0
    %134 = vmatpush1.msra.mxu0 %v34
    %135 = vmatprep.subr.mxu0 0.0
    %136 = vmatpush1.msra.mxu0 %v33
    %137 = vmatprep.subr.mxu0 0.0
    %138 = vmatpush1.msra.mxu0 %v32
    %139 = vmatprep.subr.mxu0 0.0
    %140 = vmatpush1.msra.mxu0 %v31
    %141 = vmatprep.subr.mxu0 0.0
    %142 = vmatpush1.msra.mxu0 %v30
    %143 = vmatprep.subr.mxu0 0.0
    %144 = vmatpush1.msra.mxu0 %v29
    %145 = vmatprep.subr.mxu0 0.0
    %146 = vmatpush1.msra.mxu0 %v28
    %147 = vmatprep.subr.mxu0 0.0
    %148 = vmatpush1.msra.mxu0 %v27
    %149 = vmatprep.subr.mxu0 0.0
    %150 = vmatpush2.msra.mxu0 %v58
    %151 = vmatprep.subr.mxu0 0.0
    %152 = vmatpush2.msra.mxu0 %v57
    %153 = vmatprep.subr.mxu0 0.0
    %154 = vmatpush2.msra.mxu0 %v56
    %155 = vmatprep.subr.mxu0 0.0
    %156 = vmatpush2.msra.mxu0 %v55
    %157 = vmatprep.subr.mxu0 0.0
    %158 = vmatpush2.msra.mxu0 %v54
    %159 = vmatprep.subr.mxu0 0.0
    %160 = vmatpush2.msra.mxu0 %v53
    %161 = vmatprep.subr.mxu0 0.0
    %162 = vmatpush2.msra.mxu0 %v52
    %163 = vmatprep.subr.mxu0 0.0
    %164 = vmatpush2.msra.mxu0 %v51
    %165 = vmatprep.subr.mxu0 0.0
    %166 = vmatpush2.msra.mxu0 %v50
    %167 = vmatprep.subr.mxu0 0.0
    %168 = vmatpush2.msra.mxu0 %v49
    %169 = vmatprep.subr.mxu0 0.0
    %170 = vmatpush2.msra.mxu0 %v48
    %171 = vmatprep.subr.mxu0 0.0
    %172 = vmatpush2.msra.mxu0 %v47
    %173 = vmatprep.subr.mxu0 0.0
    %174 = vmatpush2.msra.mxu0 %v46
    %175 = vmatprep.subr.mxu0 0.0
    %176 = vmatpush2.msra.mxu0 %v45
    %177 = vmatprep.subr.mxu0 0.0
    %178 = vmatpush2.msra.mxu0 %v44
    %179 = vmatprep.subr.mxu0 0.0
    %180 = vmatpush2.msra.mxu0 %v43
    %181 = vmatprep.mubr.f32.mxu0 %v104
    %182 = vmatmul.mubr.f32.gmra.mxu0 %v98
    %v183 = vpop.f32.mrf.mxu0
    %v184 = vadd.f32 0.0, %v183
    %v185 = vpop.f32.mrf.mxu0
    %186 = vdwg.mxu0
    %187 = vmatprep.subr.mxu0 0.0
    %188 = vmatpush1.msra.mxu0 %v74
    %189 = vmatprep.subr.mxu0 0.0
    %190 = vmatpush1.msra.mxu0 %v73
    %191 = vmatprep.subr.mxu0 0.0
    %192 = vmatpush1.msra.mxu0 %v72
    %193 = vmatprep.subr.mxu0 0.0
    %194 = vmatpush1.msra.mxu0 %v71
    %195 = vmatprep.subr.mxu0 0.0
    %196 = vmatpush1.msra.mxu0 %v70
    %197 = vmatprep.subr.mxu0 0.0
    %198 = vmatpush1.msra.mxu0 %v69
    %199 = vmatprep.subr.mxu0 0.0
    %200 = vmatpush1.msra.mxu0 %v68
    %201 = vmatprep.subr.mxu0 0.0
    %202 = vmatpush1.msra.mxu0 %v67
    %203 = vmatprep.subr.mxu0 0.0
    %204 = vmatpush1.msra.mxu0 %v66
    %205 = vmatprep.subr.mxu0 0.0
    %206 = vmatpush1.msra.mxu0 %v65
    %207 = vmatprep.subr.mxu0 0.0
    %208 = vmatpush1.msra.mxu0 %v64
    %209 = vmatprep.subr.mxu0 0.0
    %210 = vmatpush1.msra.mxu0 %v63
    %211 = vmatprep.subr.mxu0 0.0
    %212 = vmatpush1.msra.mxu0 %v62
    %213 = vmatprep.subr.mxu0 0.0
    %214 = vmatpush1.msra.mxu0 %v61
    %215 = vmatprep.subr.mxu0 0.0
    %216 = vmatpush1.msra.mxu0 %v60
    %217 = vmatprep.subr.mxu0 0.0
    %218 = vmatpush1.msra.mxu0 %v59
    %219 = vmatprep.subr.mxu0 0.0
    %220 = vmatpush2.msra.mxu0 %v90
    %221 = vmatprep.subr.mxu0 0.0
    %222 = vmatpush2.msra.mxu0 %v89
    %223 = vmatprep.subr.mxu0 0.0
    %224 = vmatpush2.msra.mxu0 %v88
    %225 = vmatprep.subr.mxu0 0.0
    %226 = vmatpush2.msra.mxu0 %v87
    %227 = vmatprep.subr.mxu0 0.0
    %228 = vmatpush2.msra.mxu0 %v86
    %229 = vmatprep.subr.mxu0 0.0
    %230 = vmatpush2.msra.mxu0 %v85
    %231 = vmatprep.subr.mxu0 0.0
    %232 = vmatpush2.msra.mxu0 %v84
    %233 = vmatprep.subr.mxu0 0.0
    %234 = vmatpush2.msra.mxu0 %v83
    %235 = vmatprep.subr.mxu0 0.0
    %236 = vmatpush2.msra.mxu0 %v82
    %237 = vmatprep.subr.mxu0 0.0
    %238 = vmatpush2.msra.mxu0 %v81
    %239 = vmatprep.subr.mxu0 0.0
    %240 = vmatpush2.msra.mxu0 %v80
    %241 = vmatprep.subr.mxu0 0.0
    %242 = vmatpush2.msra.mxu0 %v79
    %243 = vmatprep.subr.mxu0 0.0
    %244 = vmatpush2.msra.mxu0 %v78
    %245 = vmatprep.subr.mxu0 0.0
    %246 = vmatpush2.msra.mxu0 %v77
    %247 = vmatprep.subr.mxu0 0.0
    %248 = vmatpush2.msra.mxu0 %v76
    %249 = vmatprep.subr.mxu0 0.0
    %250 = vmatpush2.msra.mxu0 %v75
    %251 = vmatprep.mubr.f32.mxu0 %v116
    %252 = vmatmul.mubr.f32.gmra.mxu0 %v110
    %v253 = vpop.f32.mrf.mxu0
    %v254 = vadd.f32 %v184, %v253
    %v255 = vpop.f32.mrf.mxu0
    %256 = vdwg.mxu0
    %257 = vst [vmem:[#allocation5] sm:$0xff] %v254
    // Predicated region
    $region14: #{tpu_custom_call.1} parent=1 // pred_check
      _
    $region15: #{tpu_custom_call.1} parent=1 // pred_check_branch
      %259 = sbr.rel (0) target = $region17
    $region16: #{tpu_custom_call.1} parent=1 // pred_region
      %s261 = ssub.s32 128, 128
      %262 = vsyncadd [#allocation4], %s261
      %s264 = sshll.u32 [#allocation5], 4
      %s265 = int_to_ptr.vmem [resolvable:$true] %s264
      %267 = dma.vmem_to_hbm [thread:$0]  %s265, 128, %s2, [#allocation4]
    $region17: #{tpu_custom_call.1} parent=1 // pred_fallthru
      _
    // Predicated region
    $region18: #{tpu_custom_call.1} parent=1 // pred_check
      _
    $region19: #{tpu_custom_call.1} parent=1 // pred_check_branch
      %269 = sbr.rel (0) target = $region21
    $region20: #{tpu_custom_call.1} parent=1 // pred_region
      %270 = dma.done [#allocation4], 128
    $region21: #{tpu_custom_call.1} parent=1 // pred_fallthru
      _
    %271 = vsyncpa [#allocation3], 1
    %272 = vsyncpa [#allocation4], 1

</llo_original>
